<compile_context>
chip_gen: v5e
topology: v5e:2x2
jax: 0.10.0
libtpu: 0.0.40
codegen_flags: <defaults>
</compile_context>

<pallas_src>
import functools

import jax
import jax.numpy as jnp
from jax.experimental import pallas as pl
from jax.experimental.pallas import tpu as pltpu


def _round_up(a, b):
    return ((a + b - 1) // b) * b


def _cdiv(a, b):
    return -(-a // b)


# ---------------------------------------------------------------------------
# Kernels
# ---------------------------------------------------------------------------
def _linear_kernel_acc(x_ref, w_ref, b_ref, o_ref, acc_ref, *, compute_dtype):
    """Grid (M//tm, N//tn, K//tk); K is the last ('arbitrary') reduction axis."""
    k = pl.program_id(2)

    @pl.when(k == 0)
    def _():
        # Fold the bias into the accumulator init (no epilogue add).
        acc_ref[...] = jnp.broadcast_to(
            b_ref[...].astype(jnp.float32), acc_ref.shape
        )

    x = x_ref[...]
    w = w_ref[...]
    if compute_dtype is not None:
        # In-kernel cast: feeds the bf16 MXU without an extra wrapper HBM pass.
        x = x.astype(compute_dtype)
        w = w.astype(compute_dtype)
    # x tile: (tm, tk); w tile (pre-transposed, (K, N) layout): (tk, tn).
    acc_ref[...] += jnp.dot(x, w, preferred_element_type=jnp.float32)

    @pl.when(k == pl.num_programs(2) - 1)
    def _():
        o_ref[...] = acc_ref[...].astype(o_ref.dtype)


def _linear_kernel_single_k(x_ref, w_ref, b_ref, o_ref, *, compute_dtype):
    """Fast path: whole K in one block -> no reduction axis, no scratch."""
    x = x_ref[...]
    w = w_ref[...]
    if compute_dtype is not None:
        x = x.astype(compute_dtype)
        w = w.astype(compute_dtype)
    acc = jnp.dot(x, w, preferred_element_type=jnp.float32)
    o_ref[...] = (acc + b_ref[...].astype(jnp.float32)).astype(o_ref.dtype)


# ---------------------------------------------------------------------------
# Helpers
# ---------------------------------------------------------------------------
def _vmem_capacity_bytes():
    """Generation-aware VMEM capacity; conservative (v7x per-core) fallback."""
    try:
        info = pltpu.get_tpu_info()
        cap = getattr(info, "vmem_capacity_bytes", None)
        if cap:
            return int(cap)
    except Exception:
        pass
    return 64 * 1024 * 1024


def prepare_linear_weight(weight, compute_dtype=None):
    """One-time (parameter-load-time) prep of a torch-layout (out_dim, in_dim)
    weight: transpose to the kernel-preferred (in_dim, out_dim) layout and
    optionally cast once (e.g. to bf16) so the per-call weight DMA is halved."""
    w_t = jnp.asarray(weight).T
    if compute_dtype is not None:
        w_t = w_t.astype(compute_dtype)
    return w_t


# ---------------------------------------------------------------------------
# Wrapper
# ---------------------------------------------------------------------------
def linear_norm(x, weight, bias=None, *, weight_transposed=False,
                tm=512, tn=512, tk=1024, compute_dtype=None):
    """y = x @ W.T + b   (torch.nn.Linear forward semantics).

    x:      (..., in_dim)
    weight: torch layout (out_dim, in_dim), or -- preferred, pass
            weight_transposed=True -- the (in_dim, out_dim) array produced
            once by prepare_linear_weight().
    bias:   (out_dim,) or None
    compute_dtype: e.g. jnp.bfloat16 -> x tile is cast in-kernel and the
            matmul runs on the bf16 MXU; accumulation stays f32 and the
            output keeps x.dtype (looser tolerance vs. an f32 reference).
    """
    x = jnp.asarray(x)
    weight = jnp.asarray(weight)
    if weight_transposed:
        in_dim, out_dim = weight.shape
        w_t = weight
    else:
        out_dim, in_dim = weight.shape
        # One-off transpose (costs an HBM pass): prefer prepare_linear_weight
        # at parameter-load time for repeated calls.
        w_t = weight.T
    if x.shape[-1] != in_dim:
        raise ValueError(f"x last dim {x.shape[-1]} != in_dim {in_dim}")

    lead_shape = x.shape[:-1]
    out_dtype = x.dtype
    x2d = x.reshape(-1, in_dim)
    M = x2d.shape[0]

    if bias is None:
        bias = jnp.zeros((out_dim,), dtype=out_dtype)
    b2d = jnp.asarray(bias).reshape(1, out_dim)

    # Effective in-kernel compute dtype (accumulation is always f32).
    cd = compute_dtype
    if cd is None and w_t.dtype != x2d.dtype:
        cd = jnp.promote_types(x2d.dtype, w_t.dtype)
    if cd is not None:
        cd = jnp.dtype(cd)

    x_item = jnp.dtype(x2d.dtype).itemsize
    w_item = jnp.dtype(w_t.dtype).itemsize
    out_item = jnp.dtype(out_dtype).itemsize
    row_align = 8 if x_item >= 4 else 16

    # --- generation-aware VMEM budget --------------------------------------
    vmem_cap = _vmem_capacity_bytes()
    budget = int(vmem_cap * 0.60)                       # tile working-set budget
    vmem_limit = int(min(vmem_cap * 0.75, vmem_cap - 8 * 1024 * 1024))

    def _vmem_bytes(tm_, tn_, tk_):
        stream = 2 * (tm_ * tk_ * x_item + tk_ * tn_ * w_item + tn_ * 4)
        out_b = 2 * tm_ * tn_ * out_item
        acc_b = tm_ * tn_ * 4
        return stream + out_b + acc_b

    # --- tile selection: biggest MXU-friendly tiles that fit the budget ----
    tm_eff = max(row_align, min(_round_up(tm, row_align), _round_up(M, row_align)))
    tn_eff = max(128, min(_round_up(tn, 128), _round_up(out_dim, 128)))
    tk_cap = max(128, min(_round_up(tk, 128), _round_up(in_dim, 128)))

    while _vmem_bytes(tm_eff, tn_eff, tk_cap) > budget:
        if tk_cap > 512:
            tk_cap = max(512, _round_up(tk_cap // 2, 128))
        elif tn_eff > 256:
            tn_eff = max(256, _round_up(tn_eff // 2, 128))
        elif tm_eff > 256:
            tm_eff = max(256, _round_up(tm_eff // 2, row_align))
        elif tk_cap > 128:
            tk_cap = max(128, _round_up(tk_cap // 2, 128))
        elif tn_eff > 128:
            tn_eff = max(128, _round_up(tn_eff // 2, 128))
        elif tm_eff > row_align:
            tm_eff = max(row_align, _round_up(tm_eff // 2, row_align))
        else:
            break

    # Megacore balance (v7x: 2 TCs sharded over 'parallel' axes): give both
    # cores at least one (i, j) tile when the problem is splittable.
    if _cdiv(M, tm_eff) * _cdiv(out_dim, tn_eff) == 1:
        if out_dim >= 256:
            tn_eff = max(128, _round_up(_cdiv(out_dim, 2), 128))
        elif M > row_align:
            tm_eff = max(row_align, _round_up(_cdiv(M, 2), row_align))

    # --- K handling: avoid K padding whenever possible ---------------------
    single_k = _round_up(in_dim, 128) <= tk_cap
    if single_k:
        k_block = in_dim            # block == full array dim -> no padding
        tk_eff = in_dim
        gk = 1
        needs_k_pad = False
        K_pad = in_dim
    else:
        # Prefer a tk that exactly divides in_dim (no pad, no extra HBM pass).
        tk_eff = 0
        d = tk_cap
        while d >= 128:
            if in_dim % d == 0:
                tk_eff = d
                break
            d -= 128
        if tk_eff:
            K_pad = in_dim
            needs_k_pad = False
        else:
            tk_eff = tk_cap
            K_pad = _round_up(in_dim, tk_eff)
            needs_k_pad = True     # K zero-pad is mathematically required
        gk = K_pad // tk_eff

    if needs_k_pad:
        x2d = jnp.pad(x2d, ((0, 0), (0, K_pad - in_dim)))
        w_t = jnp.pad(w_t, ((0, K_pad - in_dim), (0, 0)))

    gm = _cdiv(M, tm_eff)
    gn = _cdiv(out_dim, tn_eff)

    cost = pl.CostEstimate(
        flops=2 * M * out_dim * in_dim,
        transcendentals=0,
        bytes_accessed=(M * in_dim * x_item + in_dim * out_dim * w_item
                        + out_dim * 4 + M * out_dim * out_item),
    )

    if gk == 1:
        kern = functools.partial(_linear_kernel_single_k, compute_dtype=cd)
        out2d = pl.pallas_call(
            kern,
            out_shape=jax.ShapeDtypeStruct((M, out_dim), out_dtype),
            grid_spec=pltpu.PrefetchScalarGridSpec(
                num_scalar_prefetch=0,
                grid=(gm, gn),
                in_specs=[
                    pl.BlockSpec((tm_eff, k_block), lambda i, j: (i, 0)),   # x
                    pl.BlockSpec((k_block, tn_eff), lambda i, j: (0, j)),   # W.T (K,N)
                    pl.BlockSpec((1, tn_eff), lambda i, j: (0, j)),         # bias
                ],
                out_specs=pl.BlockSpec((tm_eff, tn_eff), lambda i, j: (i, j)),
            ),
            compiler_params=pltpu.CompilerParams(
                dimension_semantics=("parallel", "parallel"),
                vmem_limit_bytes=vmem_limit),
            cost_estimate=cost,
        )(x2d, w_t, b2d)
    else:
        kern = functools.partial(_linear_kernel_acc, compute_dtype=cd)
        out2d = pl.pallas_call(
            kern,
            out_shape=jax.ShapeDtypeStruct((M, out_dim), out_dtype),
            grid_spec=pltpu.PrefetchScalarGridSpec(
                num_scalar_prefetch=0,
                grid=(gm, gn, gk),
                in_specs=[
                    pl.BlockSpec((tm_eff, tk_eff), lambda i, j, k: (i, k)),  # x
                    pl.BlockSpec((tk_eff, tn_eff), lambda i, j, k: (k, j)),  # W.T (K,N)
                    pl.BlockSpec((1, tn_eff), lambda i, j, k: (0, j)),       # bias
                ],
                out_specs=pl.BlockSpec((tm_eff, tn_eff), lambda i, j, k: (i, j)),
                scratch_shapes=[pltpu.VMEM((tm_eff, tn_eff), jnp.float32)],
            ),
            compiler_params=pltpu.CompilerParams(
                dimension_semantics=("parallel", "parallel", "arbitrary"),
                vmem_limit_bytes=vmem_limit),
            cost_estimate=cost,
        )(x2d, w_t, b2d)

    return out2d.reshape(*lead_shape, out_dim)


# ---------------------------------------------------------------------------
# Parameter init (matches torch LinearNorm.__init__ semantics)
# ---------------------------------------------------------------------------
def init_linear_norm_params(key, in_dim, out_dim, w_init_gain="linear"):
    """xavier_uniform_ weight (gain('linear')==1) + default nn.Linear bias init."""
    kw, kb = jax.random.split(key)
    gain = 1.0
    limit = gain * (6.0 / (in_dim + out_dim)) ** 0.5
    weight = jax.random.uniform(
        kw, (out_dim, in_dim), minval=-limit, maxval=limit, dtype=jnp.float32
    )
    b_limit = 1.0 / (in_dim ** 0.5)
    bias = jax.random.uniform(
        kb, (out_dim,), minval=-b_limit, maxval=b_limit, dtype=jnp.float32
    )
    return weight, bias


if __name__ == "__main__":
    key = jax.random.PRNGKey(0)
    k_x, k_p = jax.random.split(key)

    # --- test 1: small module-like shapes (single-K fast path) --------------
    batch, seq, in_dim, out_dim = 2, 8, 32, 64
    x = jax.random.normal(k_x, (batch, seq, in_dim), dtype=jnp.float32)
    weight, bias = init_linear_norm_params(k_p, in_dim, out_dim)
    w_t = prepare_linear_weight(weight)                 # one-time layout prep
    y = jax.block_until_ready(linear_norm(x, w_t, bias, weight_transposed=True))
    y_ref = x @ weight.T + bias
    assert y.shape == (batch, seq, out_dim)
    assert jnp.allclose(y, y_ref, atol=1e-5, rtol=1e-5)

    # --- test 2: K-tiled (3-D grid) reduction path, f32 ---------------------
    in2, out2 = 512, 384
    x2 = jax.random.normal(k_x, (2, 32, in2), dtype=jnp.float32)
    w2, b2 = init_linear_norm_params(k_p, in2, out2)
    w2_t = prepare_linear_weight(w2)
    y2 = jax.block_until_ready(
        linear_norm(x2, w2_t, b2, weight_transposed=True, tk=256))
    y2_ref = x2 @ w2.T + b2
    assert jnp.allclose(y2, y2_ref, atol=1e-4, rtol=1e-4)

    # --- test 3: bf16 MXU path (in-kernel x cast, bf16-cached weight) -------
    w2_bf16 = prepare_linear_weight(w2, compute_dtype=jnp.bfloat16)
    y3 = jax.block_until_ready(
        linear_norm(x2, w2_bf16, b2, weight_transposed=True, tk=256,
                    compute_dtype=jnp.bfloat16))
    assert jnp.allclose(y3, y2_ref, atol=5e-2, rtol=5e-2)   # bf16 tolerance

    # --- test 4: ragged K (zero-pad fallback) + ragged N --------------------
    in4, out4 = 320, 192
    x4 = jax.random.normal(k_x, (2, 16, in4), dtype=jnp.float32)
    w4, b4 = init_linear_norm_params(k_p, in4, out4)
    y4 = jax.block_until_ready(
        linear_norm(x4, prepare_linear_weight(w4), b4,
                    weight_transposed=True, tk=128))
    y4_ref = x4 @ w4.T + b4
    assert jnp.allclose(y4, y4_ref, atol=1e-4, rtol=1e-4)

    print("KERNEL_OK")
</pallas_src>

<mosaic_0001>
module attributes {stable_mosaic.version = 11 : i64} {
  func.func @_linear_kernel_single_k(%arg0: i32, %arg1: i32, %arg2: memref<8x32xf32, #tpu.memory_space<vmem>>, %arg3: memref<32x128xf32, #tpu.memory_space<vmem>>, %arg4: memref<1x128xf32, #tpu.memory_space<vmem>>, %arg5: memref<8x128xf32, #tpu.memory_space<vmem>>) attributes {dimension_semantics = [#tpu.dimension_semantics<parallel>, #tpu.dimension_semantics<parallel>], iteration_bounds = array<i64: 2, 1>, scalar_prefetch = 0 : i64, scratch_operands = 0 : i64, tpu.core_type = #tpu.core_type<tc>, window_params = [{transform_indices = @transform_0, window_bounds = array<i64: 8, 32>}, {transform_indices = @transform_1, window_bounds = array<i64: 32, 128>}, {transform_indices = @transform_2, window_bounds = array<i64: 1, 128>}, {transform_indices = @transform_3, window_bounds = array<i64: 8, 128>}]} {
    %c0 = arith.constant 0 : index
    %c0_0 = arith.constant 0 : index
    %0 = vector.load %arg2[%c0, %c0_0] : memref<8x32xf32, #tpu.memory_space<vmem>>, vector<8x32xf32>
    %c0_1 = arith.constant 0 : index
    %c0_2 = arith.constant 0 : index
    %1 = vector.load %arg3[%c0_1, %c0_2] : memref<32x128xf32, #tpu.memory_space<vmem>>, vector<32x128xf32>
    %cst = arith.constant dense<0.000000e+00> : vector<8x128xf32>
    %2 = tpu.matmul %0, %1, %cst {dimension_numbers = #tpu.dot_dimension_numbers<[1], [0], [0], [1], [0, 0, 1, 1], [], []>} : vector<8x32xf32>, vector<32x128xf32>, vector<8x128xf32> -> vector<8x128xf32>
    %c0_3 = arith.constant 0 : index
    %c0_4 = arith.constant 0 : index
    %3 = vector.load %arg4[%c0_3, %c0_4] : memref<1x128xf32, #tpu.memory_space<vmem>>, vector<1x128xf32>
    %4 = vector.broadcast %3 : vector<1x128xf32> to vector<8x128xf32>
    %5 = arith.addf %2, %4 : vector<8x128xf32>
    %c0_5 = arith.constant 0 : index
    %c0_6 = arith.constant 0 : index
    %6 = vector.load %arg5[%c0_5, %c0_6] : memref<8x128xf32, #tpu.memory_space<vmem>>, vector<8x128xf32>
    tpu.vector_store %arg5[%c0_5, %c0_6], %5 {strides = array<i32>} : memref<8x128xf32, #tpu.memory_space<vmem>>, vector<8x128xf32>,
    return
  }
  func.func @transform_0(%arg0: i32, %arg1: i32) -> (i32, i32) {
    %c0_i32 = arith.constant 0 : i32
    %c0_i32_0 = arith.constant 0 : i32
    return %arg0, %c0_i32 : i32, i32
  }
  func.func @transform_1(%arg0: i32, %arg1: i32) -> (i32, i32) {
    %c0_i32 = arith.constant 0 : i32
    %c0_i32_0 = arith.constant 0 : i32
    return %c0_i32, %arg1 : i32, i32
  }
  func.func @transform_2(%arg0: i32, %arg1: i32) -> (i32, i32) {
    %c0_i32 = arith.constant 0 : i32
    %c0_i32_0 = arith.constant 0 : i32
    return %c0_i32, %arg1 : i32, i32
  }
  func.func @transform_3(%arg0: i32, %arg1: i32) -> (i32, i32) {
    %c0_i32 = arith.constant 0 : i32
    return %arg0, %arg1 : i32, i32
  }
}

</mosaic_0001>

<llo_original>
// kernel: tpu_custom_call.1
$region0: #{tpu_custom_call.1}
  #allocation0 [shape = 'u32[]', space=smem, size = 0x4, offset = 0x4, fixed_abs, tag = 'smem constant byte address 0x4 - core index']
  #allocation1 [shape = 'u32[72,128]{1,0:T(1,128)}', space=vmem, size = 0x9000, scoped, tag = 'internal scratch']
  %s0 = inlined_call_operand.hbm [shape: f32[16,32], index: 0, kind: input, shape index: {}]
  %s1 = inlined_call_operand.hbm [shape: f32[32,64], index: 1, kind: input, shape index: {}]
  %s2 = inlined_call_operand.vmem [shape: f32[1,64], index: 2, kind: input, shape index: {}]
  %s3 = inlined_call_operand.hbm [shape: f32[16,64], index: 3, kind: output, shape index: {}]
  %s4 = sld [smem:[#allocation0]]
  $region53: #{tpu_custom_call.1} parent=0
    _
  %s6 = ssub.s32 1, %s4
  %s7 = scalar_select 0, %s6, %s4
  $region1: #{tpu_custom_call.1} parent=0
    #allocation2 [shape = 'u8[8192]{0}', space=vmem, size = 0x2000, scoped, tag = 'input window, operand 0']
    #allocation3 [shape = 's32[2]{0}', space=sflag, size = 0x8, scoped, tag = 'scoped memory for tpu_custom_call.1']
    #allocation4 [shape = 's32[2]{0}', space=sflag, size = 0x8, scoped, tag = 'scoped memory for tpu_custom_call.1']
    #allocation5 [shape = 'u8[16384]{0}', space=vmem, size = 0x4000, scoped, tag = 'input window, operand 1, single buffered']
    #allocation6 [shape = 's32[1]{0}', space=sflag, size = 0x4, scoped, tag = 'scoped memory for tpu_custom_call.1']
    #allocation7 [shape = 'u8[8192]{0}', space=vmem, size = 0x2000, scoped, tag = 'output window, operand 0']
    %8 = vsyncpa [#allocation3], 0
    %s9 = scalar_lea.sflag [#allocation3], 1
    %10 = vsyncpa %s9, 0
    %11 = vsyncpa [#allocation6], 0
    %12 = vsyncpa [#allocation4], 0
    %s13 = scalar_lea.sflag [#allocation4], 1
    %14 = vsyncpa %s13, 0
    loop: start=0, step=1, limit=4
    $region2: #{tpu_custom_call.1} parent=1 // loop_pre_header
      _
    $region3: #{tpu_custom_call.1} parent=1 // loop_header
      %s16 = sphi 0, %s20
      %p17 = scmp.ge.s32.totalorder %s16, 4
      %s23 = sphi 0, %s35
      %s24 = sphi 0, %s31
      %s25 = sphi 0, %s23
      %s26 = sphi 0, %s24
      %s27 = sphi 0, %s25
      %s28 = sphi 0, %s26
      %s38 = sphi 0, %s40
      %s41 = sphi 0, %s38
      %s42 = sphi 0, %s41
      %s58 = sphi 0, %s42
      %s64 = sphi 0, %s66
      %s67 = sphi 0, %s64
      %s68 = sphi 0, %s67
      %s84 = sphi 0, %s68
      %s90 = sphi 0, %s92
      %s93 = sphi 0, %s90
      %s94 = sphi 0, %s93
      %s110 = sphi 0, %s94
      %s118 = sphi 0, %s120
      %s121 = sphi 0, %s118
      %s122 = sphi 0, %s121
      %s138 = sphi 0, %s122
    $region4: #{tpu_custom_call.1} parent=1 // loop_header_branch
      %19 = sbr.rel (%p17) target = $region8
    $region5: #{tpu_custom_call.1} parent=1 // loop_body
      %s21 = ssub.s32 %s16, 1
      %s22 = ssub.s32 %s16, 2
      %s29 = sadd.s32 1, %s24
      %p30 = scmp.ge.s32.totalorder %s29, 1
      %s31 = scalar_select %p30, 0, %s29
      %s32 = sadd.s32 1, %s23
      %s33 = scalar_select %p30, %s32, %s23
      %p34 = scmp.ge.s32.totalorder %s33, 2
      %s35 = scalar_select %p34, 0, %s33
      %s36 = ssub.s32 %s23, %s35
      %p37 = scmp.eq.s32.totalorder %s36, 0
      %s39 = sadd.s32 %s38, 1
      %s40 = scalar_select %p37, %s38, %s39
      %p43 = pneg %p37
      %p44 = scmp.eq.s32.totalorder %s16, 1
      %p45 = por %p43, %p44
      %p46 = scmp.ne.s32.totalorder %s38, %s41
      %p47 = scmp.eq.s32.totalorder %s16, 0
      %p48 = por %p46, %p47
      %p49 = scmp.ne.s32.totalorder %s38, %s41
      %p50 = scmp.eq.s32.totalorder %s21, 1
      %p51 = por %p49, %p50
      %p52 = scmp.ne.s32.totalorder %s41, %s42
      %p53 = scmp.eq.s32.totalorder %s21, 0
      %p54 = por %p52, %p53
      %p55 = scmp.ne.s32.totalorder %s41, %s42
      %p56 = scmp.eq.s32.totalorder %s22, 1
      %p57 = por %p55, %p56
      %p59 = scmp.ne.s32.totalorder %s42, %s58
      %p60 = scmp.eq.s32.totalorder %s22, 0
      %p61 = por %p59, %p60
      %s62 = ssub.s32 %s24, %s31
      %p63 = scmp.eq.s32.totalorder %s62, 0
      %s65 = sadd.s32 %s64, 1
      %s66 = scalar_select %p63, %s64, %s65
      %p69 = pneg %p63
      %p70 = scmp.eq.s32.totalorder %s16, 1
      %p71 = por %p69, %p70
      %p72 = scmp.ne.s32.totalorder %s64, %s67
      %p73 = scmp.eq.s32.totalorder %s16, 0
      %p74 = por %p72, %p73
      %p75 = scmp.ne.s32.totalorder %s64, %s67
      %p76 = scmp.eq.s32.totalorder %s21, 1
      %p77 = por %p75, %p76
      %p78 = scmp.ne.s32.totalorder %s67, %s68
      %p79 = scmp.eq.s32.totalorder %s21, 0
      %p80 = por %p78, %p79
      %p81 = scmp.ne.s32.totalorder %s67, %s68
      %p82 = scmp.eq.s32.totalorder %s22, 1
      %p83 = por %p81, %p82
      %p85 = scmp.ne.s32.totalorder %s68, %s84
      %p86 = scmp.eq.s32.totalorder %s22, 0
      %p87 = por %p85, %p86
      %s88 = ssub.s32 %s24, %s31
      %p89 = scmp.eq.s32.totalorder %s88, 0
      %s91 = sadd.s32 %s90, 1
      %s92 = scalar_select %p89, %s90, %s91
      %p95 = pneg %p89
      %p96 = scmp.eq.s32.totalorder %s16, 1
      %p97 = por %p95, %p96
      %p98 = scmp.ne.s32.totalorder %s90, %s93
      %p99 = scmp.eq.s32.totalorder %s16, 0
      %p100 = por %p98, %p99
      %p101 = scmp.ne.s32.totalorder %s90, %s93
      %p102 = scmp.eq.s32.totalorder %s21, 1
      %p103 = por %p101, %p102
      %p104 = scmp.ne.s32.totalorder %s93, %s94
      %p105 = scmp.eq.s32.totalorder %s21, 0
      %p106 = por %p104, %p105
      %p107 = scmp.ne.s32.totalorder %s93, %s94
      %p108 = scmp.eq.s32.totalorder %s22, 1
      %p109 = por %p107, %p108
      %p111 = scmp.ne.s32.totalorder %s94, %s110
      %p112 = scmp.eq.s32.totalorder %s22, 0
      %p113 = por %p111, %p112
      %s114 = ssub.s32 %s23, %s35
      %s115 = ssub.s32 %s24, %s31
      %s116 = sor.u32 %s114, %s115
      %p117 = scmp.eq.s32.totalorder %s116, 0
      %s119 = sadd.s32 %s118, 1
      %s120 = scalar_select %p117, %s118, %s119
      %p123 = pneg %p117
      %p124 = scmp.eq.s32.totalorder %s16, 1
      %p125 = por %p123, %p124
      %p126 = scmp.ne.s32.totalorder %s118, %s121
      %p127 = scmp.eq.s32.totalorder %s16, 0
      %p128 = por %p126, %p127
      %p129 = scmp.ne.s32.totalorder %s118, %s121
      %p130 = scmp.eq.s32.totalorder %s21, 1
      %p131 = por %p129, %p130
      %p132 = scmp.ne.s32.totalorder %s121, %s122
      %p133 = scmp.eq.s32.totalorder %s21, 0
      %p134 = por %p132, %p133
      %p135 = scmp.ne.s32.totalorder %s121, %s122
      %p136 = scmp.eq.s32.totalorder %s22, 1
      %p137 = por %p135, %p136
      %p139 = scmp.ne.s32.totalorder %s122, %s138
      %p140 = scmp.eq.s32.totalorder %s22, 0
      %p141 = por %p139, %p140
      %p142 = scmp.le.s32.totalorder 1, %s16
      %p143 = scmp.lt.s32.totalorder %s16, 3
      %p144 = pnand %p142, %p143
      %p145 = pneg %p144
      // Predicated region
      $region9: #{tpu_custom_call.1} parent=5 // pred_check
        _
      $region10: #{tpu_custom_call.1} parent=5 // pred_check_branch
        %147 = sbr.rel (%p144) target = $region12
      $region11: #{tpu_custom_call.1} parent=5 // pred_region
        %s148 = ssub.s32 %s16, 1
        // Predicated region
        $region13: #{tpu_custom_call.1} parent=11 // pred_check
          %p149 = pneg %p80
        $region14: #{tpu_custom_call.1} parent=11 // pred_check_branch
          %151 = sbr.rel (%p149) target = $region16
        $region15: #{tpu_custom_call.1} parent=11 // pred_region
          %153 = vsyncadd [#allocation6], 0
          %s154 = smul.addr %s26, 8
          %s155 = scalar_lea.hbm %s1, %s154
          %s156 = sshll.u32 %s155, 4
          %s157 = int_to_ptr.hbm [resolvable:$true] %s156
          %s158 = sshll.u32 [#allocation5], 4
          %s159 = int_to_ptr.vmem [resolvable:$true] %s158
          %164 = dma.hbm_to_vmem [thread:$0]  %s157, 512, %s159, [#allocation6], 128, 128, 8
        $region16: #{tpu_custom_call.1} parent=11 // pred_fallthru
          _
        // Predicated region
        $region17: #{tpu_custom_call.1} parent=11 // pred_check
          %p165 = pneg %p106
        $region18: #{tpu_custom_call.1} parent=11 // pred_check_branch
          %167 = sbr.rel (%p165) target = $region20
        $region19: #{tpu_custom_call.1} parent=11 // pred_region
          %p168 = scmp.lt.s32.totalorder %s26, 0
          %s169 = scalar_select %p168, %s26, 0
          %s170 = scalar_lea.vmem %s2, %s169
        $region20: #{tpu_custom_call.1} parent=11 // pred_fallthru
          _
      $region12: #{tpu_custom_call.1} parent=5 // pred_fallthru
        _
      %p171 = scmp.lt.s32.totalorder %s16, 2
      // Predicated region
      $region21: #{tpu_custom_call.1} parent=5 // pred_check
        %p172 = pneg %p171
      $region22: #{tpu_custom_call.1} parent=5 // pred_check_branch
        %174 = sbr.rel (%p172) target = $region24
      $region23: #{tpu_custom_call.1} parent=5 // pred_region
        // Predicated region
        $region25: #{tpu_custom_call.1} parent=23 // pred_check
          %p175 = pneg %p48
        $region26: #{tpu_custom_call.1} parent=23 // pred_check_branch
          %177 = sbr.rel (%p175) target = $region28
        $region27: #{tpu_custom_call.1} parent=23 // pred_region
          %s178 = sand.u32 %s38, 1
          %s179 = scalar_lea.sflag [#allocation3], %s178
          %s180 = sand.u32 %s38, 1
          %s181 = smul.addr %s180, 8
          %s182 = scalar_lea.vmem [#allocation2], %s181
          %184 = vsyncadd %s179, 0
          %s185 = smul.addr %s23, 8
          %s186 = scalar_lea.hbm %s0, %s185
          %s188 = sshll.u32 %s186, 4
          %s189 = int_to_ptr.hbm [resolvable:$true] %s188
          %s190 = sshll.u32 %s182, 4
          %s191 = int_to_ptr.vmem [resolvable:$true] %s190
          %193 = dma.hbm_to_vmem [thread:$0]  %s189, 128, %s191, %s179
        $region28: #{tpu_custom_call.1} parent=23 // pred_fallthru
          _
      $region24: #{tpu_custom_call.1} parent=5 // pred_fallthru
        _
      %p194 = scmp.le.s32.totalorder 1, %s16
      %p195 = scmp.lt.s32.totalorder %s16, 3
      %p196 = pnand %p194, %p195
      %p197 = pneg %p196
      // Predicated region
      $region29: #{tpu_custom_call.1} parent=5 // pred_check
        _
      $region30: #{tpu_custom_call.1} parent=5 // pred_check_branch
        %199 = sbr.rel (%p196) target = $region32
      $region31: #{tpu_custom_call.1} parent=5 // pred_region
        %s200 = ssub.s32 %s16, 1
        %s201 = sand.u32 %s41, 1
        %s202 = scalar_lea.sflag [#allocation3], %s201
        %s203 = sand.u32 %s41, 1
        %s204 = smul.addr %s203, 8
        %s205 = scalar_lea.vmem [#allocation2], %s204
        // Predicated region
        $region33: #{tpu_custom_call.1} parent=31 // pred_check
          %p206 = pneg %p54
        $region34: #{tpu_custom_call.1} parent=31 // pred_check_branch
          %208 = sbr.rel (%p206) target = $region36
        $region35: #{tpu_custom_call.1} parent=31 // pred_region
          %210 = dma.done %s202, 128
        $region36: #{tpu_custom_call.1} parent=31 // pred_fallthru
          _
        // Predicated region
        $region37: #{tpu_custom_call.1} parent=31 // pred_check
          %p211 = pneg %p80
        $region38: #{tpu_custom_call.1} parent=31 // pred_check_branch
          %213 = sbr.rel (%p211) target = $region40
        $region39: #{tpu_custom_call.1} parent=31 // pred_region
          %215 = dma.done [#allocation6], 512
        $region40: #{tpu_custom_call.1} parent=31 // pred_fallthru
          _
        %s216 = sand.u32 %s41, 1
        %s217 = scalar_lea.sflag [#allocation3], %s216
        %s218 = sand.u32 %s41, 1
        %s219 = smul.addr %s218, 8
        %s220 = scalar_lea.vmem [#allocation2], %s219
        %p221 = pneg %p54
        %p222 = pneg %p51
        %p223 = pneg %p80
        %p224 = pneg %p77
        %p225 = scmp.lt.s32.totalorder %s26, 0
        %s226 = scalar_select %p225, %s26, 0
        %s227 = scalar_lea.vmem %s2, %s226
        %p228 = pneg %p106
        %p229 = pneg %p103
        %p230 = pneg %p134
        %p231 = pneg %p131
        %s232 = sand.u32 %s121, 1
        %s233 = scalar_lea.sflag [#allocation4], %s232
        %s234 = sand.u32 %s121, 1
        %s235 = smul.addr %s234, 8
        %s236 = scalar_lea.vmem [#allocation7], %s235
        %p237 = scmp.lt.s32.totalorder %s26, 0
        %s238 = scalar_select %p237, %s26, 0
        %s239 = scalar_lea.vmem %s2, %s238
        %v240 = vld [vmem:[%s205] sm:$0xff]
        %v241 = vld [vmem:[#allocation5] sm:$0xff]
        %v242 = vld [vmem:[#allocation5 + $0x8] sm:$0xff]
        %v243 = vld [vmem:[#allocation5 + $0x10] sm:$0xff]
        %v244 = vld [vmem:[#allocation5 + $0x18] sm:$0xff]
        %v245 = vld [vmem:[%s239] sm:$0x1]
        %v247 = vperm.slane %v245, 0
        %vm249 = vcmask 261120
        %v251 = vsel %vm249, %v240, 0
        %253 = vmatpush.msra.mxu0 0.0
        %254 = vmatpush.msra.mxu0 0.0
        %255 = vmatpush.msra.mxu0 0.0
        %256 = vmatpush.msra.mxu0 0.0
        %257 = vmatpush.msra.mxu0 0.0
        %258 = vmatpush.msra.mxu0 0.0
        %259 = vmatpush.msra.mxu0 0.0
        %260 = vmatpush.msra.mxu0 0.0
        %261 = vmatpush.msra.mxu0 0.0
        %262 = vmatpush.msra.mxu0 0.0
        %263 = vmatpush.msra.mxu0 0.0
        %264 = vmatpush.msra.mxu0 0.0
        %265 = vmatpush.msra.mxu0 %v244
        %266 = vmatpush.msra.mxu0 %v243
        %267 = vmatpush.msra.mxu0 %v242
        %268 = vmatpush.msra.mxu0 %v241
        %269 = vmatmul.f32.gmra.mxu0 %v251
        %v270 = vpop.f32.mrf.mxu0
        %v271 = vadd.f32 %v247, %v270
        %272 = vdwg.mxu0
        %273 = vst [vmem:[%s236] sm:$0xff] %v271
        %s274 = sand.u32 %s121, 1
        %s275 = scalar_lea.sflag [#allocation4], %s274
        %s276 = sand.u32 %s121, 1
        %s277 = smul.addr %s276, 8
        %s278 = scalar_lea.vmem [#allocation7], %s277
        // Predicated region
        $region41: #{tpu_custom_call.1} parent=31 // pred_check
          %p279 = pneg %p131
        $region42: #{tpu_custom_call.1} parent=31 // pred_check_branch
          %281 = sbr.rel (%p279) target = $region44
        $region43: #{tpu_custom_call.1} parent=31 // pred_region
          %283 = vsyncadd %s275, 0
          %s284 = sadd.s32 %s26, %s25
          %s285 = smul.addr %s284, 8
          %s286 = scalar_lea.hbm %s3, %s285
          %s288 = sshll.u32 %s278, 4
          %s289 = int_to_ptr.vmem [resolvable:$true] %s288
          %s290 = sshll.u32 %s286, 4
          %s291 = int_to_ptr.hbm [resolvable:$true] %s290
          %293 = dma.vmem_to_hbm [thread:$0]  %s289, 128, %s291, %s275
        $region44: #{tpu_custom_call.1} parent=31 // pred_fallthru
          _
      $region32: #{tpu_custom_call.1} parent=5 // pred_fallthru
        _
      %p294 = scmp.le.s32.totalorder 2, %s16
      // Predicated region
      $region45: #{tpu_custom_call.1} parent=5 // pred_check
        %p295 = pneg %p294
      $region46: #{tpu_custom_call.1} parent=5 // pred_check_branch
        %297 = sbr.rel (%p295) target = $region48
      $region47: #{tpu_custom_call.1} parent=5 // pred_region
        %s298 = ssub.s32 %s16, 2
        // Predicated region
        $region49: #{tpu_custom_call.1} parent=47 // pred_check
          %p299 = pneg %p137
        $region50: #{tpu_custom_call.1} parent=47 // pred_check_branch
          %301 = sbr.rel (%p299) target = $region52
        $region51: #{tpu_custom_call.1} parent=47 // pred_region
          %s302 = sand.u32 %s122, 1
          %s303 = scalar_lea.sflag [#allocation4], %s302
          %s304 = sand.u32 %s122, 1
          %s305 = smul.addr %s304, 8
          %s306 = scalar_lea.vmem [#allocation7], %s305
          %308 = dma.done %s303, 128
        $region52: #{tpu_custom_call.1} parent=47 // pred_fallthru
          _
      $region48: #{tpu_custom_call.1} parent=5 // pred_fallthru
        _
    $region6: #{tpu_custom_call.1} parent=1 // loop_footer
      %s20 = sadd.s32 1, %s16
    $region7: #{tpu_custom_call.1} parent=1 // loop_footer_branch
      %15 = sbr.rel target = $region3
    $region8: #{tpu_custom_call.1} parent=1 // loop_exit
      _
    %309 = vsyncpa [#allocation3], 1
    %s310 = scalar_lea.sflag [#allocation3], 1
    %311 = vsyncpa %s310, 1
    %312 = vsyncpa [#allocation6], 1
    %313 = vsyncpa [#allocation4], 1
    %s314 = scalar_lea.sflag [#allocation4], 1
    %315 = vsyncpa %s314, 1

</llo_original>
